<compile_context>
chip_gen: v7x
topology: tpu7x:2x2x1
jax: 0.10.0
libtpu: 0.0.40
codegen_flags: <defaults>
</compile_context>

<pallas_src>
import jax
import jax.numpy as jnp
from jax import lax
from jax.experimental import pallas as pl
from jax.experimental.pallas import tpu as pltpu

LANE = 128
_VMEM_LIMIT_BYTES = 48 * 1024 * 1024   # <= v7x 64 MiB physical; headroom on v5e/v6e


# ---------------------------------------------------------------------------
# Kernel 1: conv-as-matmul on one row tile:  (TR, 9*Cin) @ (9*Cin, Cp) -> (TR, Cp)
# plus per-tile channel sum / sum-of-squares partials for BatchNorm.
# ---------------------------------------------------------------------------
def conv_stats_kernel(p_ref, w_ref, y_ref, stats_ref):
    acc = jnp.dot(p_ref[...], w_ref[...],
                  preferred_element_type=jnp.float32)        # (TR, Cp) f32
    y_ref[...] = acc.astype(y_ref.dtype)

    # Per-tile partial sums -> distinct output block per grid step (axis stays
    # parallel); batch reduction happens in the wrapper.
    s = jnp.sum(acc, axis=0, keepdims=True)                  # (1, Cp)
    sq = jnp.sum(acc * acc, axis=0, keepdims=True)           # (1, Cp)
    stats_ref[...] = jnp.concatenate([s, sq], axis=0).reshape(stats_ref.shape)


# ---------------------------------------------------------------------------
# Kernel 2: fused folded-BatchNorm affine + ReLU on a flat lane-dense 2D view.
# ---------------------------------------------------------------------------
def bn_relu_kernel(y_ref, scale_ref, shift_ref, o_ref):
    y = y_ref[...].astype(jnp.float32)
    o_ref[...] = jnp.maximum(y * scale_ref[0] + shift_ref[0], 0.0).astype(o_ref.dtype)


def _conv_row_tile(rows, k, cp):
    """Row tile: multiple of 8, divides `rows`, bounded by VMEM block budgets."""
    cap = min(rows,
              max(8, (2 << 20) // (cp * 4)),     # ~2 MiB y block
              max(8, (8 << 20) // (k * 4)))      # ~8 MiB patch block
    cap = max(8, (cap // 8) * 8)
    if cap >= rows:
        return rows
    for t in range(cap, 7, -8):
        if rows % t == 0:
            return t
    return rows                                   # fall back to one full block


def conv_block_forward(x_nchw, w_oihw, bias, gamma, beta, eps=1e-5,
                       compute_dtype=jnp.float32, y_dtype=jnp.float32):
    """ConvBlock forward. x_nchw: (N, Cin, H, W) f32. Returns (N, Cout, H, W)."""
    del bias  # cancelled exactly by the train-mode BatchNorm mean subtraction
    N, Cin, H, W = x_nchw.shape
    Cout, _, KH, KW = w_oihw.shape
    assert KH == 3 and KW == 3, "kernel implements the module default 3x3 / s1 / p1"

    Cp = pl.cdiv(Cout, LANE) * LANE               # lane-dense padded channel count
    K = KH * KW * Cin
    rows = N * H * W

    # im2col patches built in XLA (fuses with the NCHW->NHWC transpose + zero halo).
    x = jnp.transpose(x_nchw, (0, 2, 3, 1)).astype(jnp.float32)      # (N, H, W, Cin)
    xp = jnp.pad(x, ((0, 0), (1, 1), (1, 1), (0, 0)))                # padding = 1
    patches = jnp.concatenate(
        [xp[:, kh:kh + H, kw:kw + W, :] for kh in range(KH) for kw in range(KW)],
        axis=-1).reshape(rows, K).astype(compute_dtype)

    # Weights -> (9*Cin, Cout), zero-padded along Cout to Cp (tap-major, Cin-minor,
    # matching the patch concat order).
    w2 = jnp.transpose(w_oihw, (2, 3, 1, 0)).reshape(K, Cout)
    w2 = jnp.pad(w2, ((0, 0), (0, Cp - Cout))).astype(compute_dtype)

    TR = _conv_row_tile(rows, K, Cp)
    n_tiles = rows // TR

    y, stats = pl.pallas_call(
        conv_stats_kernel,
        out_shape=(
            jax.ShapeDtypeStruct((rows, Cp), y_dtype),
            jax.ShapeDtypeStruct((n_tiles, 2, Cp), jnp.float32),
        ),
        grid=(n_tiles,),
        in_specs=[
            pl.BlockSpec((TR, K), lambda r: (r, 0)),
            pl.BlockSpec((K, Cp), lambda r: (0, 0)),          # resident weights
        ],
        out_specs=(
            pl.BlockSpec((TR, Cp), lambda r: (r, 0)),
            pl.BlockSpec((1, 2, Cp), lambda r: (r, 0, 0)),    # per-tile partial stats
        ),
        compiler_params=pltpu.CompilerParams(
            dimension_semantics=("parallel",),
            vmem_limit_bytes=_VMEM_LIMIT_BYTES),
    )(patches, w2)

    # BatchNorm2d training-mode statistics (biased variance), folded to scale/shift.
    # TODO(synk): E[y^2]-E[y]^2 in f32 can lose precision at very large N*H*W;
    # Welford-style centered per-tile partials would be safer there.
    cnt = float(rows)
    csum = jnp.sum(stats[:, 0, :], axis=0)                    # (Cp,)
    csq = jnp.sum(stats[:, 1, :], axis=0)                     # (Cp,)
    mean = csum / cnt
    var = jnp.maximum(csq / cnt - mean * mean, 0.0)           # cancellation guard
    gamma_p = jnp.pad(gamma, (0, Cp - Cout)).astype(jnp.float32)
    beta_p = jnp.pad(beta, (0, Cp - Cout)).astype(jnp.float32)
    scale1 = gamma_p / jnp.sqrt(var + eps)
    shift1 = beta_p - mean * scale1
    scale = scale1.reshape(1, Cp)
    shift = shift1.reshape(1, Cp)

    # Fused BN + ReLU: flat (rows, Cp) lane-dense pass, ~4 MiB tiles, in place.
    TR2 = rows if rows <= 8192 else 8192
    out_flat = pl.pallas_call(
        bn_relu_kernel,
        out_shape=jax.ShapeDtypeStruct((rows, Cp), y_dtype),
        grid=(pl.cdiv(rows, TR2),),
        in_specs=[
            pl.BlockSpec((TR2, Cp), lambda r: (r, 0)),
            pl.BlockSpec((1, Cp), lambda r: (0, 0)),
            pl.BlockSpec((1, Cp), lambda r: (0, 0)),
        ],
        out_specs=pl.BlockSpec((TR2, Cp), lambda r: (r, 0)),
        input_output_aliases={0: 0},                          # write in place over y
        compiler_params=pltpu.CompilerParams(
            dimension_semantics=("parallel",),
            vmem_limit_bytes=_VMEM_LIMIT_BYTES),
    )(y, scale, shift)

    out = out_flat.astype(jnp.float32).reshape(N, H, W, Cp)[:, :, :, :Cout]
    return jnp.transpose(out, (0, 3, 1, 2))                   # NHWC -> NCHW


# ---------------------------------------------------------------------------
# Pure-JAX reference (same semantics) for correctness check.
# ---------------------------------------------------------------------------
def conv_block_ref(x_nchw, w_oihw, bias, gamma, beta, eps=1e-5):
    y = lax.conv_general_dilated(
        x_nchw, w_oihw, window_strides=(1, 1), padding=((1, 1), (1, 1)),
        dimension_numbers=("NCHW", "OIHW", "NCHW"))
    y = y + bias.reshape(1, -1, 1, 1)
    mean = jnp.mean(y, axis=(0, 2, 3), keepdims=True)
    var = jnp.mean((y - mean) ** 2, axis=(0, 2, 3), keepdims=True)
    y = (y - mean) / jnp.sqrt(var + eps)
    y = y * gamma.reshape(1, -1, 1, 1) + beta.reshape(1, -1, 1, 1)
    return jnp.maximum(y, 0.0)


if __name__ == "__main__":
    key = jax.random.PRNGKey(0)
    N, Cin, H, W = 2, 4, 16, 16
    Cout, Ksz = 8, 3

    k_x, k_w, k_b = jax.random.split(key, 3)
    x = jax.random.normal(k_x, (N, Cin, H, W), jnp.float32)

    # PyTorch Conv2d default init: U(-1/sqrt(fan_in), 1/sqrt(fan_in))
    fan_in = Cin * Ksz * Ksz
    bound = 1.0 / (fan_in ** 0.5)
    w = jax.random.uniform(k_w, (Cout, Cin, Ksz, Ksz), jnp.float32, -bound, bound)
    b = jax.random.uniform(k_b, (Cout,), jnp.float32, -bound, bound)
    # BatchNorm2d default init
    gamma = jnp.ones((Cout,), jnp.float32)
    beta = jnp.zeros((Cout,), jnp.float32)

    fwd = jax.jit(conv_block_forward)
    out = jax.block_until_ready(fwd(x, w, b, gamma, beta))

    ref = conv_block_ref(x, w, b, gamma, beta)
    assert out.shape == (N, Cout, H, W)
    assert jnp.allclose(out, ref, rtol=1e-4, atol=1e-4), (
        float(jnp.max(jnp.abs(out - ref))))

    print("KERNEL_OK")
</pallas_src>

<mosaic_0001>
module attributes {stable_mosaic.version = 11 : i64} {
  func.func @conv_stats_kernel(%arg0: i32, %arg1: memref<512x36xf32, #tpu.memory_space<vmem>>, %arg2: memref<36x128xf32, #tpu.memory_space<vmem>>, %arg3: memref<512x128xf32, #tpu.memory_space<vmem>>, %arg4: memref<1x2x128xf32, #tpu.memory_space<vmem>>) attributes {dimension_semantics = [#tpu.dimension_semantics<parallel>], iteration_bounds = array<i64: 1>, scalar_prefetch = 0 : i64, scratch_operands = 0 : i64, tpu.core_type = #tpu.core_type<tc>, window_params = [{transform_indices = @transform_0, window_bounds = array<i64: 512, 36>}, {pipeline_mode = #tpu.pipeline_mode<synchronous>, transform_indices = @transform_1, window_bounds = array<i64: 36, 128>}, {transform_indices = @transform_2, window_bounds = array<i64: 512, 128>}, {transform_indices = @transform_3, window_bounds = array<i64: 1, 2, 128>}]} {
    %c0 = arith.constant 0 : index
    %c0_0 = arith.constant 0 : index
    %0 = vector.load %arg1[%c0, %c0_0] : memref<512x36xf32, #tpu.memory_space<vmem>>, vector<512x36xf32>
    %c0_1 = arith.constant 0 : index
    %c0_2 = arith.constant 0 : index
    %1 = vector.load %arg2[%c0_1, %c0_2] : memref<36x128xf32, #tpu.memory_space<vmem>>, vector<36x128xf32>
    %cst = arith.constant dense<0.000000e+00> : vector<512x128xf32>
    %2 = tpu.matmul %0, %1, %cst {dimension_numbers = #tpu.dot_dimension_numbers<[1], [0], [0], [1], [0, 0, 1, 1], [], []>} : vector<512x36xf32>, vector<36x128xf32>, vector<512x128xf32> -> vector<512x128xf32>
    %c0_3 = arith.constant 0 : index
    %c0_4 = arith.constant 0 : index
    %3 = vector.load %arg3[%c0_3, %c0_4] : memref<512x128xf32, #tpu.memory_space<vmem>>, vector<512x128xf32>
    tpu.vector_store %arg3[%c0_3, %c0_4], %2 {strides = array<i32>} : memref<512x128xf32, #tpu.memory_space<vmem>>, vector<512x128xf32>,
    %cst_5 = arith.constant dense<0.000000e+00> : vector<128xf32>
    %4 = vector.multi_reduction <add>, %2, %cst_5 [0] : vector<512x128xf32> to vector<128xf32>
    %5 = vector.shape_cast %4 : vector<128xf32> to vector<1x128xf32>
    %6 = arith.mulf %2, %2 : vector<512x128xf32>
    %cst_6 = arith.constant dense<0.000000e+00> : vector<128xf32>
    %7 = vector.multi_reduction <add>, %6, %cst_6 [0] : vector<512x128xf32> to vector<128xf32>
    %8 = vector.shape_cast %7 : vector<128xf32> to vector<1x128xf32>
    %9 = tpu.concatenate %5, %8 in 0 : vector<1x128xf32>, vector<1x128xf32> -> vector<2x128xf32>
    %10 = vector.shape_cast %9 : vector<2x128xf32> to vector<1x2x128xf32>
    %c0_7 = arith.constant 0 : index
    %c0_8 = arith.constant 0 : index
    %c0_9 = arith.constant 0 : index
    %11 = vector.load %arg4[%c0_7, %c0_8, %c0_9] : memref<1x2x128xf32, #tpu.memory_space<vmem>>, vector<1x2x128xf32>
    tpu.vector_store %arg4[%c0_7, %c0_8, %c0_9], %10 {strides = array<i32>} : memref<1x2x128xf32, #tpu.memory_space<vmem>>, vector<1x2x128xf32>,
    return
  }
  func.func @transform_0(%arg0: i32) -> (i32, i32) {
    %c0_i32 = arith.constant 0 : i32
    %c0_i32_0 = arith.constant 0 : i32
    return %arg0, %c0_i32 : i32, i32
  }
  func.func @transform_1(%arg0: i32) -> (i32, i32) {
    %c0_i32 = arith.constant 0 : i32
    %c0_i32_0 = arith.constant 0 : i32
    %c0_i32_1 = arith.constant 0 : i32
    return %c0_i32, %c0_i32_0 : i32, i32
  }
  func.func @transform_2(%arg0: i32) -> (i32, i32) {
    %c0_i32 = arith.constant 0 : i32
    %c0_i32_0 = arith.constant 0 : i32
    return %arg0, %c0_i32 : i32, i32
  }
  func.func @transform_3(%arg0: i32) -> (i32, i32, i32) {
    %c0_i32 = arith.constant 0 : i32
    %c0_i32_0 = arith.constant 0 : i32
    %c0_i32_1 = arith.constant 0 : i32
    return %arg0, %c0_i32, %c0_i32_0 : i32, i32, i32
  }
}

module attributes {stable_mosaic.version = 11 : i64} {
  func.func @bn_relu_kernel(%arg0: i32, %arg1: memref<512x128xf32, #tpu.memory_space<vmem>>, %arg2: memref<1x128xf32, #tpu.memory_space<vmem>>, %arg3: memref<1x128xf32, #tpu.memory_space<vmem>>, %arg4: memref<512x128xf32, #tpu.memory_space<vmem>>) attributes {dimension_semantics = [#tpu.dimension_semantics<parallel>], iteration_bounds = array<i64: 1>, scalar_prefetch = 0 : i64, scratch_operands = 0 : i64, tpu.core_type = #tpu.core_type<tc>, window_params = [{transform_indices = @transform_0, window_bounds = array<i64: 512, 128>}, {pipeline_mode = #tpu.pipeline_mode<synchronous>, transform_indices = @transform_1, window_bounds = array<i64: 1, 128>}, {pipeline_mode = #tpu.pipeline_mode<synchronous>, transform_indices = @transform_2, window_bounds = array<i64: 1, 128>}, {transform_indices = @transform_3, window_bounds = array<i64: 512, 128>}]} {
    %c0 = arith.constant 0 : index
    %c0_0 = arith.constant 0 : index
    %0 = vector.load %arg1[%c0, %c0_0] : memref<512x128xf32, #tpu.memory_space<vmem>>, vector<512x128xf32>
    %c0_1 = arith.constant 0 : index
    %c0_2 = arith.constant 0 : index
    %1 = vector.load %arg2[%c0_1, %c0_2] : memref<1x128xf32, #tpu.memory_space<vmem>>, vector<1x128xf32>
    %2 = vector.shape_cast %1 : vector<1x128xf32> to vector<128xf32>
    %3 = vector.shape_cast %2 : vector<128xf32> to vector<1x128xf32>
    %4 = vector.broadcast %3 : vector<1x128xf32> to vector<512x128xf32>
    %5 = arith.mulf %0, %4 : vector<512x128xf32>
    %c0_3 = arith.constant 0 : index
    %c0_4 = arith.constant 0 : index
    %6 = vector.load %arg3[%c0_3, %c0_4] : memref<1x128xf32, #tpu.memory_space<vmem>>, vector<1x128xf32>
    %7 = vector.shape_cast %6 : vector<1x128xf32> to vector<128xf32>
    %8 = vector.shape_cast %7 : vector<128xf32> to vector<1x128xf32>
    %9 = vector.broadcast %8 : vector<1x128xf32> to vector<512x128xf32>
    %10 = arith.addf %5, %9 : vector<512x128xf32>
    %cst = arith.constant 0.000000e+00 : f32
    %11 = vector.broadcast %cst : f32 to vector<512x128xf32>
    %12 = arith.maximumf %10, %11 : vector<512x128xf32>
    %c0_5 = arith.constant 0 : index
    %c0_6 = arith.constant 0 : index
    %13 = vector.load %arg4[%c0_5, %c0_6] : memref<512x128xf32, #tpu.memory_space<vmem>>, vector<512x128xf32>
    tpu.vector_store %arg4[%c0_5, %c0_6], %12 {strides = array<i32>} : memref<512x128xf32, #tpu.memory_space<vmem>>, vector<512x128xf32>,
    return
  }
  func.func @transform_0(%arg0: i32) -> (i32, i32) {
    %c0_i32 = arith.constant 0 : i32
    %c0_i32_0 = arith.constant 0 : i32
    return %arg0, %c0_i32 : i32, i32
  }
  func.func @transform_1(%arg0: i32) -> (i32, i32) {
    %c0_i32 = arith.constant 0 : i32
    %c0_i32_0 = arith.constant 0 : i32
    %c0_i32_1 = arith.constant 0 : i32
    return %c0_i32, %c0_i32_0 : i32, i32
  }
  func.func @transform_2(%arg0: i32) -> (i32, i32) {
    %c0_i32 = arith.constant 0 : i32
    %c0_i32_0 = arith.constant 0 : i32
    %c0_i32_1 = arith.constant 0 : i32
    return %c0_i32, %c0_i32_0 : i32, i32
  }
  func.func @transform_3(%arg0: i32) -> (i32, i32) {
    %c0_i32 = arith.constant 0 : i32
    %c0_i32_0 = arith.constant 0 : i32
    return %arg0, %c0_i32 : i32, i32
  }
}

</mosaic_0001>

<llo_original>
// kernel: conv_block_forward.3
$region0: #{conv_block_forward.3}
  #allocation0 [shape = 'u32[]', space=smem, size = 0x4, offset = 0x4, fixed_abs, tag = 'smem constant byte address 0x4 - core index']
  #allocation1 [shape = 'u32[144,128]{1,0:T(1,128)}', space=vmem, size = 0x12000, scoped, tag = 'internal scratch']
  %s0 = inlined_call_operand.vmem [shape: f32[512,128], index: 0, kind: input, shape index: {}, may-alias: {0,3}]
  %s1 = inlined_call_operand.vmem [shape: f32[1,128], index: 1, kind: input, shape index: {}]
  %s2 = inlined_call_operand.vmem [shape: f32[1,128], index: 2, kind: input, shape index: {}]
  %s3 = inlined_call_operand.vmem [shape: f32[512,128], index: 3, kind: output, shape index: {}, may-alias: {0,3}]
  %s4 = sld [smem:[#allocation0]]
  $region22: #{conv_block_forward.3} parent=0
    _
  %s6 = ssub.s32 1, %s4
  %s7 = scalar_select 0, %s6, %s4
  // Predicated region
  $region2: #{conv_block_forward.3} parent=0 // pred_check
    _
  $region3: #{conv_block_forward.3} parent=0 // pred_check_branch
    %9 = sbr.rel (0) target = $region5
  $region4: #{conv_block_forward.3} parent=0 // pred_region
    _
  $region5: #{conv_block_forward.3} parent=0 // pred_fallthru
    _
  // Predicated region
  $region6: #{conv_block_forward.3} parent=0 // pred_check
    _
  $region7: #{conv_block_forward.3} parent=0 // pred_check_branch
    %11 = sbr.rel (0) target = $region9
  $region8: #{conv_block_forward.3} parent=0 // pred_region
    _
  $region9: #{conv_block_forward.3} parent=0 // pred_fallthru
    _
  // Predicated region
  $region10: #{conv_block_forward.3} parent=0 // pred_check
    _
  $region11: #{conv_block_forward.3} parent=0 // pred_check_branch
    %13 = sbr.rel (0) target = $region13
  $region12: #{conv_block_forward.3} parent=0 // pred_region
    _
  $region13: #{conv_block_forward.3} parent=0 // pred_fallthru
    _
  %v14 = vld [vmem:[%s0] sm:$0xff]
  %v15 = vld [vmem:[%s0 + $0x8] sm:$0xff]
  %v16 = vld [vmem:[%s0 + $0x10] sm:$0xff]
  %v17 = vld [vmem:[%s0 + $0x18] sm:$0xff]
  %v18 = vld [vmem:[%s0 + $0x20] sm:$0xff]
  %v19 = vld [vmem:[%s0 + $0x28] sm:$0xff]
  %v20 = vld [vmem:[%s0 + $0x30] sm:$0xff]
  %v21 = vld [vmem:[%s0 + $0x38] sm:$0xff]
  %v22 = vld [vmem:[%s0 + $0x40] sm:$0xff]
  %v23 = vld [vmem:[%s0 + $0x48] sm:$0xff]
  %v24 = vld [vmem:[%s0 + $0x50] sm:$0xff]
  %v25 = vld [vmem:[%s0 + $0x58] sm:$0xff]
  %v26 = vld [vmem:[%s0 + $0x60] sm:$0xff]
  %v27 = vld [vmem:[%s0 + $0x68] sm:$0xff]
  %v28 = vld [vmem:[%s0 + $0x70] sm:$0xff]
  %v29 = vld [vmem:[%s0 + $0x78] sm:$0xff]
  %v30 = vld [vmem:[%s0 + $0x80] sm:$0xff]
  %v31 = vld [vmem:[%s0 + $0x88] sm:$0xff]
  %v32 = vld [vmem:[%s0 + $0x90] sm:$0xff]
  %v33 = vld [vmem:[%s0 + $0x98] sm:$0xff]
  %v34 = vld [vmem:[%s0 + $0xa0] sm:$0xff]
  %v35 = vld [vmem:[%s0 + $0xa8] sm:$0xff]
  %v36 = vld [vmem:[%s0 + $0xb0] sm:$0xff]
  %v37 = vld [vmem:[%s0 + $0xb8] sm:$0xff]
  %v38 = vld [vmem:[%s0 + $0xc0] sm:$0xff]
  %v39 = vld [vmem:[%s0 + $0xc8] sm:$0xff]
  %v40 = vld [vmem:[%s0 + $0xd0] sm:$0xff]
  %v41 = vld [vmem:[%s0 + $0xd8] sm:$0xff]
  %v42 = vld [vmem:[%s0 + $0xe0] sm:$0xff]
  %v43 = vld [vmem:[%s0 + $0xe8] sm:$0xff]
  %v44 = vld [vmem:[%s0 + $0xf0] sm:$0xff]
  %v45 = vld [vmem:[%s0 + $0xf8] sm:$0xff]
  %v46 = vld [vmem:[%s0 + $0x100] sm:$0xff]
  %v47 = vld [vmem:[%s0 + $0x108] sm:$0xff]
  %v48 = vld [vmem:[%s0 + $0x110] sm:$0xff]
  %v49 = vld [vmem:[%s0 + $0x118] sm:$0xff]
  %v50 = vld [vmem:[%s0 + $0x120] sm:$0xff]
  %v51 = vld [vmem:[%s0 + $0x128] sm:$0xff]
  %v52 = vld [vmem:[%s0 + $0x130] sm:$0xff]
  %v53 = vld [vmem:[%s0 + $0x138] sm:$0xff]
  %v54 = vld [vmem:[%s0 + $0x140] sm:$0xff]
  %v55 = vld [vmem:[%s0 + $0x148] sm:$0xff]
  %v56 = vld [vmem:[%s0 + $0x150] sm:$0xff]
  %v57 = vld [vmem:[%s0 + $0x158] sm:$0xff]
  %v58 = vld [vmem:[%s0 + $0x160] sm:$0xff]
  %v59 = vld [vmem:[%s0 + $0x168] sm:$0xff]
  %v60 = vld [vmem:[%s0 + $0x170] sm:$0xff]
  %v61 = vld [vmem:[%s0 + $0x178] sm:$0xff]
  %v62 = vld [vmem:[%s0 + $0x180] sm:$0xff]
  %v63 = vld [vmem:[%s0 + $0x188] sm:$0xff]
  %v64 = vld [vmem:[%s0 + $0x190] sm:$0xff]
  %v65 = vld [vmem:[%s0 + $0x198] sm:$0xff]
  %v66 = vld [vmem:[%s0 + $0x1a0] sm:$0xff]
  %v67 = vld [vmem:[%s0 + $0x1a8] sm:$0xff]
  %v68 = vld [vmem:[%s0 + $0x1b0] sm:$0xff]
  %v69 = vld [vmem:[%s0 + $0x1b8] sm:$0xff]
  %v70 = vld [vmem:[%s0 + $0x1c0] sm:$0xff]
  %v71 = vld [vmem:[%s0 + $0x1c8] sm:$0xff]
  %v72 = vld [vmem:[%s0 + $0x1d0] sm:$0xff]
  %v73 = vld [vmem:[%s0 + $0x1d8] sm:$0xff]
  %v74 = vld [vmem:[%s0 + $0x1e0] sm:$0xff]
  %v75 = vld [vmem:[%s0 + $0x1e8] sm:$0xff]
  %v76 = vld [vmem:[%s0 + $0x1f0] sm:$0xff]
  %v77 = vld [vmem:[%s0 + $0x1f8] sm:$0xff]
  %v78 = vld [vmem:[%s1] sm:$0x1]
  %v80 = vlaneseq
  %v81 = vshrl.u32 %v80, 7
  %v82 = vsub.s32 0, %v81
  %v83 = vrot.slane %v78, %v82
  %v85 = vmul.f32 %v14, %v83
  %v86 = vmul.f32 %v15, %v83
  %v87 = vmul.f32 %v16, %v83
  %v88 = vmul.f32 %v17, %v83
  %v89 = vmul.f32 %v18, %v83
  %v90 = vmul.f32 %v19, %v83
  %v91 = vmul.f32 %v20, %v83
  %v92 = vmul.f32 %v21, %v83
  %v93 = vmul.f32 %v22, %v83
  %v94 = vmul.f32 %v23, %v83
  %v95 = vmul.f32 %v24, %v83
  %v96 = vmul.f32 %v25, %v83
  %v97 = vmul.f32 %v26, %v83
  %v98 = vmul.f32 %v27, %v83
  %v99 = vmul.f32 %v28, %v83
  %v100 = vmul.f32 %v29, %v83
  %v101 = vmul.f32 %v30, %v83
  %v102 = vmul.f32 %v31, %v83
  %v103 = vmul.f32 %v32, %v83
  %v104 = vmul.f32 %v33, %v83
  %v105 = vmul.f32 %v34, %v83
  %v106 = vmul.f32 %v35, %v83
  %v107 = vmul.f32 %v36, %v83
  %v108 = vmul.f32 %v37, %v83
  %v109 = vmul.f32 %v38, %v83
  %v110 = vmul.f32 %v39, %v83
  %v111 = vmul.f32 %v40, %v83
  %v112 = vmul.f32 %v41, %v83
  %v113 = vmul.f32 %v42, %v83
  %v114 = vmul.f32 %v43, %v83
  %v115 = vmul.f32 %v44, %v83
  %v116 = vmul.f32 %v45, %v83
  %v117 = vmul.f32 %v46, %v83
  %v118 = vmul.f32 %v47, %v83
  %v119 = vmul.f32 %v48, %v83
  %v120 = vmul.f32 %v49, %v83
  %v121 = vmul.f32 %v50, %v83
  %v122 = vmul.f32 %v51, %v83
  %v123 = vmul.f32 %v52, %v83
  %v124 = vmul.f32 %v53, %v83
  %v125 = vmul.f32 %v54, %v83
  %v126 = vmul.f32 %v55, %v83
  %v127 = vmul.f32 %v56, %v83
  %v128 = vmul.f32 %v57, %v83
  %v129 = vmul.f32 %v58, %v83
  %v130 = vmul.f32 %v59, %v83
  %v131 = vmul.f32 %v60, %v83
  %v132 = vmul.f32 %v61, %v83
  %v133 = vmul.f32 %v62, %v83
  %v134 = vmul.f32 %v63, %v83
  %v135 = vmul.f32 %v64, %v83
  %v136 = vmul.f32 %v65, %v83
  %v137 = vmul.f32 %v66, %v83
  %v138 = vmul.f32 %v67, %v83
  %v139 = vmul.f32 %v68, %v83
  %v140 = vmul.f32 %v69, %v83
  %v141 = vmul.f32 %v70, %v83
  %v142 = vmul.f32 %v71, %v83
  %v143 = vmul.f32 %v72, %v83
  %v144 = vmul.f32 %v73, %v83
  %v145 = vmul.f32 %v74, %v83
  %v146 = vmul.f32 %v75, %v83
  %v147 = vmul.f32 %v76, %v83
  %v148 = vmul.f32 %v77, %v83
  %v149 = vld [vmem:[%s2] sm:$0x1]
  %v151 = vlaneseq
  %v152 = vshrl.u32 %v151, 7
  %v153 = vsub.s32 0, %v152
  %v154 = vrot.slane %v149, %v153
  %v156 = vadd.f32 %v85, %v154
  %v157 = vadd.f32 %v86, %v154
  %v158 = vadd.f32 %v87, %v154
  %v159 = vadd.f32 %v88, %v154
  %v160 = vadd.f32 %v89, %v154
  %v161 = vadd.f32 %v90, %v154
  %v162 = vadd.f32 %v91, %v154
  %v163 = vadd.f32 %v92, %v154
  %v164 = vadd.f32 %v93, %v154
  %v165 = vadd.f32 %v94, %v154
  %v166 = vadd.f32 %v95, %v154
  %v167 = vadd.f32 %v96, %v154
  %v168 = vadd.f32 %v97, %v154
  %v169 = vadd.f32 %v98, %v154
  %v170 = vadd.f32 %v99, %v154
  %v171 = vadd.f32 %v100, %v154
  %v172 = vadd.f32 %v101, %v154
  %v173 = vadd.f32 %v102, %v154
  %v174 = vadd.f32 %v103, %v154
  %v175 = vadd.f32 %v104, %v154
  %v176 = vadd.f32 %v105, %v154
  %v177 = vadd.f32 %v106, %v154
  %v178 = vadd.f32 %v107, %v154
  %v179 = vadd.f32 %v108, %v154
  %v180 = vadd.f32 %v109, %v154
  %v181 = vadd.f32 %v110, %v154
  %v182 = vadd.f32 %v111, %v154
  %v183 = vadd.f32 %v112, %v154
  %v184 = vadd.f32 %v113, %v154
  %v185 = vadd.f32 %v114, %v154
  %v186 = vadd.f32 %v115, %v154
  %v187 = vadd.f32 %v116, %v154
  %v188 = vadd.f32 %v117, %v154
  %v189 = vadd.f32 %v118, %v154
  %v190 = vadd.f32 %v119, %v154
  %v191 = vadd.f32 %v120, %v154
  %v192 = vadd.f32 %v121, %v154
  %v193 = vadd.f32 %v122, %v154
  %v194 = vadd.f32 %v123, %v154
  %v195 = vadd.f32 %v124, %v154
  %v196 = vadd.f32 %v125, %v154
  %v197 = vadd.f32 %v126, %v154
  %v198 = vadd.f32 %v127, %v154
  %v199 = vadd.f32 %v128, %v154
  %v200 = vadd.f32 %v129, %v154
  %v201 = vadd.f32 %v130, %v154
  %v202 = vadd.f32 %v131, %v154
  %v203 = vadd.f32 %v132, %v154
  %v204 = vadd.f32 %v133, %v154
  %v205 = vadd.f32 %v134, %v154
  %v206 = vadd.f32 %v135, %v154
  %v207 = vadd.f32 %v136, %v154
  %v208 = vadd.f32 %v137, %v154
  %v209 = vadd.f32 %v138, %v154
  %v210 = vadd.f32 %v139, %v154
  %v211 = vadd.f32 %v140, %v154
  %v212 = vadd.f32 %v141, %v154
  %v213 = vadd.f32 %v142, %v154
  %v214 = vadd.f32 %v143, %v154
  %v215 = vadd.f32 %v144, %v154
  %v216 = vadd.f32 %v145, %v154
  %v217 = vadd.f32 %v146, %v154
  %v218 = vadd.f32 %v147, %v154
  %v219 = vadd.f32 %v148, %v154
  %v220 = vmax.f32 %v156, 0.0
  %v221 = vmax.f32 %v157, 0.0
  %v222 = vmax.f32 %v158, 0.0
  %v223 = vmax.f32 %v159, 0.0
  %v224 = vmax.f32 %v160, 0.0
  %v225 = vmax.f32 %v161, 0.0
  %v226 = vmax.f32 %v162, 0.0
  %v227 = vmax.f32 %v163, 0.0
  %v228 = vmax.f32 %v164, 0.0
  %v229 = vmax.f32 %v165, 0.0
  %v230 = vmax.f32 %v166, 0.0
  %v231 = vmax.f32 %v167, 0.0
  %v232 = vmax.f32 %v168, 0.0
  %v233 = vmax.f32 %v169, 0.0
  %v234 = vmax.f32 %v170, 0.0
  %v235 = vmax.f32 %v171, 0.0
  %v236 = vmax.f32 %v172, 0.0
  %v237 = vmax.f32 %v173, 0.0
  %v238 = vmax.f32 %v174, 0.0
  %v239 = vmax.f32 %v175, 0.0
  %v240 = vmax.f32 %v176, 0.0
  %v241 = vmax.f32 %v177, 0.0
  %v242 = vmax.f32 %v178, 0.0
  %v243 = vmax.f32 %v179, 0.0
  %v244 = vmax.f32 %v180, 0.0
  %v245 = vmax.f32 %v181, 0.0
  %v246 = vmax.f32 %v182, 0.0
  %v247 = vmax.f32 %v183, 0.0
  %v248 = vmax.f32 %v184, 0.0
  %v249 = vmax.f32 %v185, 0.0
  %v250 = vmax.f32 %v186, 0.0
  %v251 = vmax.f32 %v187, 0.0
  %v252 = vmax.f32 %v188, 0.0
  %v253 = vmax.f32 %v189, 0.0
  %v254 = vmax.f32 %v190, 0.0
  %v255 = vmax.f32 %v191, 0.0
  %v256 = vmax.f32 %v192, 0.0
  %v257 = vmax.f32 %v193, 0.0
  %v258 = vmax.f32 %v194, 0.0
  %v259 = vmax.f32 %v195, 0.0
  %v260 = vmax.f32 %v196, 0.0
  %v261 = vmax.f32 %v197, 0.0
  %v262 = vmax.f32 %v198, 0.0
  %v263 = vmax.f32 %v199, 0.0
  %v264 = vmax.f32 %v200, 0.0
  %v265 = vmax.f32 %v201, 0.0
  %v266 = vmax.f32 %v202, 0.0
  %v267 = vmax.f32 %v203, 0.0
  %v268 = vmax.f32 %v204, 0.0
  %v269 = vmax.f32 %v205, 0.0
  %v270 = vmax.f32 %v206, 0.0
  %v271 = vmax.f32 %v207, 0.0
  %v272 = vmax.f32 %v208, 0.0
  %v273 = vmax.f32 %v209, 0.0
  %v274 = vmax.f32 %v210, 0.0
  %v275 = vmax.f32 %v211, 0.0
  %v276 = vmax.f32 %v212, 0.0
  %v277 = vmax.f32 %v213, 0.0
  %v278 = vmax.f32 %v214, 0.0
  %v279 = vmax.f32 %v215, 0.0
  %v280 = vmax.f32 %v216, 0.0
  %v281 = vmax.f32 %v217, 0.0
  %v282 = vmax.f32 %v218, 0.0
  %v283 = vmax.f32 %v219, 0.0
  %284 = vst [vmem:[%s3] sm:$0xff] %v220
  %285 = vst [vmem:[%s3 + $0x8] sm:$0xff] %v221
  %286 = vst [vmem:[%s3 + $0x10] sm:$0xff] %v222
  %287 = vst [vmem:[%s3 + $0x18] sm:$0xff] %v223
  %288 = vst [vmem:[%s3 + $0x20] sm:$0xff] %v224
  %289 = vst [vmem:[%s3 + $0x28] sm:$0xff] %v225
  %290 = vst [vmem:[%s3 + $0x30] sm:$0xff] %v226
  %291 = vst [vmem:[%s3 + $0x38] sm:$0xff] %v227
  %292 = vst [vmem:[%s3 + $0x40] sm:$0xff] %v228
  %293 = vst [vmem:[%s3 + $0x48] sm:$0xff] %v229
  %294 = vst [vmem:[%s3 + $0x50] sm:$0xff] %v230
  %295 = vst [vmem:[%s3 + $0x58] sm:$0xff] %v231
  %296 = vst [vmem:[%s3 + $0x60] sm:$0xff] %v232
  %297 = vst [vmem:[%s3 + $0x68] sm:$0xff] %v233
  %298 = vst [vmem:[%s3 + $0x70] sm:$0xff] %v234
  %299 = vst [vmem:[%s3 + $0x78] sm:$0xff] %v235
  %300 = vst [vmem:[%s3 + $0x80] sm:$0xff] %v236
  %301 = vst [vmem:[%s3 + $0x88] sm:$0xff] %v237
  %302 = vst [vmem:[%s3 + $0x90] sm:$0xff] %v238
  %303 = vst [vmem:[%s3 + $0x98] sm:$0xff] %v239
  %304 = vst [vmem:[%s3 + $0xa0] sm:$0xff] %v240
  %305 = vst [vmem:[%s3 + $0xa8] sm:$0xff] %v241
  %306 = vst [vmem:[%s3 + $0xb0] sm:$0xff] %v242
  %307 = vst [vmem:[%s3 + $0xb8] sm:$0xff] %v243
  %308 = vst [vmem:[%s3 + $0xc0] sm:$0xff] %v244
  %309 = vst [vmem:[%s3 + $0xc8] sm:$0xff] %v245
  %310 = vst [vmem:[%s3 + $0xd0] sm:$0xff] %v246
  %311 = vst [vmem:[%s3 + $0xd8] sm:$0xff] %v247
  %312 = vst [vmem:[%s3 + $0xe0] sm:$0xff] %v248
  %313 = vst [vmem:[%s3 + $0xe8] sm:$0xff] %v249
  %314 = vst [vmem:[%s3 + $0xf0] sm:$0xff] %v250
  %315 = vst [vmem:[%s3 + $0xf8] sm:$0xff] %v251
  %316 = vst [vmem:[%s3 + $0x100] sm:$0xff] %v252
  %317 = vst [vmem:[%s3 + $0x108] sm:$0xff] %v253
  %318 = vst [vmem:[%s3 + $0x110] sm:$0xff] %v254
  %319 = vst [vmem:[%s3 + $0x118] sm:$0xff] %v255
  %320 = vst [vmem:[%s3 + $0x120] sm:$0xff] %v256
  %321 = vst [vmem:[%s3 + $0x128] sm:$0xff] %v257
  %322 = vst [vmem:[%s3 + $0x130] sm:$0xff] %v258
  %323 = vst [vmem:[%s3 + $0x138] sm:$0xff] %v259
  %324 = vst [vmem:[%s3 + $0x140] sm:$0xff] %v260
  %325 = vst [vmem:[%s3 + $0x148] sm:$0xff] %v261
  %326 = vst [vmem:[%s3 + $0x150] sm:$0xff] %v262
  %327 = vst [vmem:[%s3 + $0x158] sm:$0xff] %v263
  %328 = vst [vmem:[%s3 + $0x160] sm:$0xff] %v264
  %329 = vst [vmem:[%s3 + $0x168] sm:$0xff] %v265
  %330 = vst [vmem:[%s3 + $0x170] sm:$0xff] %v266
  %331 = vst [vmem:[%s3 + $0x178] sm:$0xff] %v267
  %332 = vst [vmem:[%s3 + $0x180] sm:$0xff] %v268
  %333 = vst [vmem:[%s3 + $0x188] sm:$0xff] %v269
  %334 = vst [vmem:[%s3 + $0x190] sm:$0xff] %v270
  %335 = vst [vmem:[%s3 + $0x198] sm:$0xff] %v271
  %336 = vst [vmem:[%s3 + $0x1a0] sm:$0xff] %v272
  %337 = vst [vmem:[%s3 + $0x1a8] sm:$0xff] %v273
  %338 = vst [vmem:[%s3 + $0x1b0] sm:$0xff] %v274
  %339 = vst [vmem:[%s3 + $0x1b8] sm:$0xff] %v275
  %340 = vst [vmem:[%s3 + $0x1c0] sm:$0xff] %v276
  %341 = vst [vmem:[%s3 + $0x1c8] sm:$0xff] %v277
  %342 = vst [vmem:[%s3 + $0x1d0] sm:$0xff] %v278
  %343 = vst [vmem:[%s3 + $0x1d8] sm:$0xff] %v279
  %344 = vst [vmem:[%s3 + $0x1e0] sm:$0xff] %v280
  %345 = vst [vmem:[%s3 + $0x1e8] sm:$0xff] %v281
  %346 = vst [vmem:[%s3 + $0x1f0] sm:$0xff] %v282
  %347 = vst [vmem:[%s3 + $0x1f8] sm:$0xff] %v283
  // Predicated region
  $region14: #{conv_block_forward.3} parent=0 // pred_check
    _
  $region15: #{conv_block_forward.3} parent=0 // pred_check_branch
    %349 = sbr.rel (0) target = $region17
  $region16: #{conv_block_forward.3} parent=0 // pred_region
    _
  $region17: #{conv_block_forward.3} parent=0 // pred_fallthru
    _
  // Predicated region
  $region18: #{conv_block_forward.3} parent=0 // pred_check
    _
  $region19: #{conv_block_forward.3} parent=0 // pred_check_branch
    %351 = sbr.rel (0) target = $region21
  $region20: #{conv_block_forward.3} parent=0 // pred_region
    _
  $region21: #{conv_block_forward.3} parent=0 // pred_fallthru
    _

// kernel: conv_block_forward.2
$region0: #{conv_block_forward.2}
  #allocation0 [shape = 'u32[]', space=smem, size = 0x4, offset = 0x4, fixed_abs, tag = 'smem constant byte address 0x4 - core index']
  #allocation1 [shape = 'u32[144,128]{1,0:T(1,128)}', space=vmem, size = 0x12000, scoped, tag = 'internal scratch']
  %s0 = inlined_call_operand.vmem [shape: f32[512,36], index: 0, kind: input, shape index: {}]
  %s1 = inlined_call_operand.vmem [shape: f32[36,128], index: 1, kind: input, shape index: {}]
  %s2 = inlined_call_operand.vmem [shape: f32[512,128], index: 2, kind: output, shape index: {0}]
  %s3 = inlined_call_operand.vmem [shape: f32[1,2,128], index: 3, kind: output, shape index: {1}]
  %4 = xla_tuple %s2, %s3
  %s5 = sld [smem:[#allocation0]]
  $region26: #{conv_block_forward.2} parent=0
    _
  %s7 = ssub.s32 1, %s5
  %s8 = scalar_select 0, %s7, %s5
  // Predicated region
  $region2: #{conv_block_forward.2} parent=0 // pred_check
    _
  $region3: #{conv_block_forward.2} parent=0 // pred_check_branch
    %10 = sbr.rel (0) target = $region5
  $region4: #{conv_block_forward.2} parent=0 // pred_region
    _
  $region5: #{conv_block_forward.2} parent=0 // pred_fallthru
    _
  // Predicated region
  $region6: #{conv_block_forward.2} parent=0 // pred_check
    _
  $region7: #{conv_block_forward.2} parent=0 // pred_check_branch
    %12 = sbr.rel (0) target = $region9
  $region8: #{conv_block_forward.2} parent=0 // pred_region
    _
  $region9: #{conv_block_forward.2} parent=0 // pred_fallthru
    _
  %v13 = vld [vmem:[%s0] sm:$0xff]
  %v14 = vld [vmem:[%s0 + $0x8] sm:$0xff]
  %v15 = vld [vmem:[%s0 + $0x10] sm:$0xff]
  %v16 = vld [vmem:[%s0 + $0x18] sm:$0xff]
  %v17 = vld [vmem:[%s0 + $0x20] sm:$0xff]
  %v18 = vld [vmem:[%s0 + $0x28] sm:$0xff]
  %v19 = vld [vmem:[%s0 + $0x30] sm:$0xff]
  %v20 = vld [vmem:[%s0 + $0x38] sm:$0xff]
  %v21 = vld [vmem:[%s0 + $0x40] sm:$0xff]
  %v22 = vld [vmem:[%s0 + $0x48] sm:$0xff]
  %v23 = vld [vmem:[%s0 + $0x50] sm:$0xff]
  %v24 = vld [vmem:[%s0 + $0x58] sm:$0xff]
  %v25 = vld [vmem:[%s0 + $0x60] sm:$0xff]
  %v26 = vld [vmem:[%s0 + $0x68] sm:$0xff]
  %v27 = vld [vmem:[%s0 + $0x70] sm:$0xff]
  %v28 = vld [vmem:[%s0 + $0x78] sm:$0xff]
  %v29 = vld [vmem:[%s0 + $0x80] sm:$0xff]
  %v30 = vld [vmem:[%s0 + $0x88] sm:$0xff]
  %v31 = vld [vmem:[%s0 + $0x90] sm:$0xff]
  %v32 = vld [vmem:[%s0 + $0x98] sm:$0xff]
  %v33 = vld [vmem:[%s0 + $0xa0] sm:$0xff]
  %v34 = vld [vmem:[%s0 + $0xa8] sm:$0xff]
  %v35 = vld [vmem:[%s0 + $0xb0] sm:$0xff]
  %v36 = vld [vmem:[%s0 + $0xb8] sm:$0xff]
  %v37 = vld [vmem:[%s0 + $0xc0] sm:$0xff]
  %v38 = vld [vmem:[%s0 + $0xc8] sm:$0xff]
  %v39 = vld [vmem:[%s0 + $0xd0] sm:$0xff]
  %v40 = vld [vmem:[%s0 + $0xd8] sm:$0xff]
  %v41 = vld [vmem:[%s0 + $0xe0] sm:$0xff]
  %v42 = vld [vmem:[%s0 + $0xe8] sm:$0xff]
  %v43 = vld [vmem:[%s0 + $0xf0] sm:$0xff]
  %v44 = vld [vmem:[%s0 + $0xf8] sm:$0xff]
  %v45 = vld [vmem:[%s0 + $0x100] sm:$0xff]
  %v46 = vld [vmem:[%s0 + $0x108] sm:$0xff]
  %v47 = vld [vmem:[%s0 + $0x110] sm:$0xff]
  %v48 = vld [vmem:[%s0 + $0x118] sm:$0xff]
  %v49 = vld [vmem:[%s0 + $0x120] sm:$0xff]
  %v50 = vld [vmem:[%s0 + $0x128] sm:$0xff]
  %v51 = vld [vmem:[%s0 + $0x130] sm:$0xff]
  %v52 = vld [vmem:[%s0 + $0x138] sm:$0xff]
  %v53 = vld [vmem:[%s0 + $0x140] sm:$0xff]
  %v54 = vld [vmem:[%s0 + $0x148] sm:$0xff]
  %v55 = vld [vmem:[%s0 + $0x150] sm:$0xff]
  %v56 = vld [vmem:[%s0 + $0x158] sm:$0xff]
  %v57 = vld [vmem:[%s0 + $0x160] sm:$0xff]
  %v58 = vld [vmem:[%s0 + $0x168] sm:$0xff]
  %v59 = vld [vmem:[%s0 + $0x170] sm:$0xff]
  %v60 = vld [vmem:[%s0 + $0x178] sm:$0xff]
  %v61 = vld [vmem:[%s0 + $0x180] sm:$0xff]
  %v62 = vld [vmem:[%s0 + $0x188] sm:$0xff]
  %v63 = vld [vmem:[%s0 + $0x190] sm:$0xff]
  %v64 = vld [vmem:[%s0 + $0x198] sm:$0xff]
  %v65 = vld [vmem:[%s0 + $0x1a0] sm:$0xff]
  %v66 = vld [vmem:[%s0 + $0x1a8] sm:$0xff]
  %v67 = vld [vmem:[%s0 + $0x1b0] sm:$0xff]
  %v68 = vld [vmem:[%s0 + $0x1b8] sm:$0xff]
  %v69 = vld [vmem:[%s0 + $0x1c0] sm:$0xff]
  %v70 = vld [vmem:[%s0 + $0x1c8] sm:$0xff]
  %v71 = vld [vmem:[%s0 + $0x1d0] sm:$0xff]
  %v72 = vld [vmem:[%s0 + $0x1d8] sm:$0xff]
  %v73 = vld [vmem:[%s0 + $0x1e0] sm:$0xff]
  %v74 = vld [vmem:[%s0 + $0x1e8] sm:$0xff]
  %v75 = vld [vmem:[%s0 + $0x1f0] sm:$0xff]
  %v76 = vld [vmem:[%s0 + $0x1f8] sm:$0xff]
  %v77 = vld [vmem:[%s1] sm:$0xff]
  %v78 = vld [vmem:[%s1 + $0x8] sm:$0xff]
  %v79 = vld [vmem:[%s1 + $0x10] sm:$0xff]
  %v80 = vld [vmem:[%s1 + $0x18] sm:$0xff]
  %v81 = vld [vmem:[%s1 + $0x20] sm:$0xf]
  %vm82 = vcmask 293888
  %v84 = vsel %vm82, %v13, 0
  %v87 = vsel %vm82, %v14, 0
  %v90 = vsel %vm82, %v15, 0
  %v93 = vsel %vm82, %v16, 0
  %v96 = vsel %vm82, %v17, 0
  %v99 = vsel %vm82, %v18, 0
  %v102 = vsel %vm82, %v19, 0
  %v105 = vsel %vm82, %v20, 0
  %v108 = vsel %vm82, %v21, 0
  %v111 = vsel %vm82, %v22, 0
  %v114 = vsel %vm82, %v23, 0
  %v117 = vsel %vm82, %v24, 0
  %v120 = vsel %vm82, %v25, 0
  %v123 = vsel %vm82, %v26, 0
  %v126 = vsel %vm82, %v27, 0
  %v129 = vsel %vm82, %v28, 0
  %v132 = vsel %vm82, %v29, 0
  %v135 = vsel %vm82, %v30, 0
  %v138 = vsel %vm82, %v31, 0
  %v141 = vsel %vm82, %v32, 0
  %v144 = vsel %vm82, %v33, 0
  %v147 = vsel %vm82, %v34, 0
  %v150 = vsel %vm82, %v35, 0
  %v153 = vsel %vm82, %v36, 0
  %v156 = vsel %vm82, %v37, 0
  %v159 = vsel %vm82, %v38, 0
  %v162 = vsel %vm82, %v39, 0
  %v165 = vsel %vm82, %v40, 0
  %v168 = vsel %vm82, %v41, 0
  %v171 = vsel %vm82, %v42, 0
  %v174 = vsel %vm82, %v43, 0
  %v177 = vsel %vm82, %v44, 0
  %v180 = vsel %vm82, %v45, 0
  %v183 = vsel %vm82, %v46, 0
  %v186 = vsel %vm82, %v47, 0
  %v189 = vsel %vm82, %v48, 0
  %v192 = vsel %vm82, %v49, 0
  %v195 = vsel %vm82, %v50, 0
  %v198 = vsel %vm82, %v51, 0
  %v201 = vsel %vm82, %v52, 0
  %v204 = vsel %vm82, %v53, 0
  %v207 = vsel %vm82, %v54, 0
  %v210 = vsel %vm82, %v55, 0
  %v213 = vsel %vm82, %v56, 0
  %v216 = vsel %vm82, %v57, 0
  %v219 = vsel %vm82, %v58, 0
  %v222 = vsel %vm82, %v59, 0
  %v225 = vsel %vm82, %v60, 0
  %v228 = vsel %vm82, %v61, 0
  %v231 = vsel %vm82, %v62, 0
  %v234 = vsel %vm82, %v63, 0
  %v237 = vsel %vm82, %v64, 0
  %v240 = vsel %vm82, %v65, 0
  %v243 = vsel %vm82, %v66, 0
  %v246 = vsel %vm82, %v67, 0
  %v249 = vsel %vm82, %v68, 0
  %v252 = vsel %vm82, %v69, 0
  %v255 = vsel %vm82, %v70, 0
  %v258 = vsel %vm82, %v71, 0
  %v261 = vsel %vm82, %v72, 0
  %v264 = vsel %vm82, %v73, 0
  %v267 = vsel %vm82, %v74, 0
  %v270 = vsel %vm82, %v75, 0
  %v273 = vsel %vm82, %v76, 0
  %vm275 = vcmask 1043456
  %v277 = vsel %vm275, %v81, 0
  %279 = vmatprep.subr.mxu0 0.0
  %280 = vmatpush1.msra.mxu0 %v77
  %281 = vmatprep.subr.mxu0 0.0
  %282 = vmatpush1.msra.mxu0 %v78
  %283 = vmatprep.subr.mxu0 0.0
  %284 = vmatpush1.msra.mxu0 %v79
  %285 = vmatprep.subr.mxu0 0.0
  %286 = vmatpush1.msra.mxu0 %v80
  %287 = vmatprep.subr.mxu0 0.0
  %288 = vmatpush1.msra.mxu0 %v277
  %289 = vmatprep.subr.mxu0 0.0
  %290 = vmatpush1.msra.mxu0 0.0
  %291 = vmatprep.subr.mxu0 0.0
  %292 = vmatpush1.msra.mxu0 0.0
  %293 = vmatprep.subr.mxu0 0.0
  %294 = vmatpush1.msra.mxu0 0.0
  %295 = vmatprep.subr.mxu0 0.0
  %296 = vmatpush1.msra.mxu0 0.0
  %297 = vmatprep.subr.mxu0 0.0
  %298 = vmatpush1.msra.mxu0 0.0
  %299 = vmatprep.subr.mxu0 0.0
  %300 = vmatpush1.msra.mxu0 0.0
  %301 = vmatprep.subr.mxu0 0.0
  %302 = vmatpush1.msra.mxu0 0.0
  %303 = vmatprep.subr.mxu0 0.0
  %304 = vmatpush1.msra.mxu0 0.0
  %305 = vmatprep.subr.mxu0 0.0
  %306 = vmatpush1.msra.mxu0 0.0
  %307 = vmatprep.subr.mxu0 0.0
  %308 = vmatpush1.msra.mxu0 0.0
  %309 = vmatprep.subr.mxu0 0.0
  %310 = vmatpush1.msra.mxu0 0.0
  %311 = vmatprep.subr.mxu0 0.0
  %312 = vmatpush1.msra.mxu0 0.0
  %313 = vmatprep.subr.mxu0 0.0
  %314 = vmatpush1.msra.mxu0 0.0
  %315 = vmatprep.subr.mxu0 0.0
  %316 = vmatpush1.msra.mxu0 0.0
  %317 = vmatprep.subr.mxu0 0.0
  %318 = vmatpush1.msra.mxu0 0.0
  %319 = vmatprep.subr.mxu0 0.0
  %320 = vmatpush1.msra.mxu0 0.0
  %321 = vmatprep.subr.mxu0 0.0
  %322 = vmatpush1.msra.mxu0 0.0
  %323 = vmatprep.subr.mxu0 0.0
  %324 = vmatpush1.msra.mxu0 0.0
  %325 = vmatprep.subr.mxu0 0.0
  %326 = vmatpush1.msra.mxu0 0.0
  %327 = vmatprep.subr.mxu0 0.0
  %328 = vmatpush1.msra.mxu0 0.0
  %329 = vmatprep.subr.mxu0 0.0
  %330 = vmatpush1.msra.mxu0 0.0
  %331 = vmatprep.subr.mxu0 0.0
  %332 = vmatpush1.msra.mxu0 0.0
  %333 = vmatprep.subr.mxu0 0.0
  %334 = vmatpush1.msra.mxu0 0.0
  %335 = vmatprep.subr.mxu0 0.0
  %336 = vmatpush1.msra.mxu0 0.0
  %337 = vmatprep.subr.mxu0 0.0
  %338 = vmatpush1.msra.mxu0 0.0
  %339 = vmatprep.subr.mxu0 0.0
  %340 = vmatpush1.msra.mxu0 0.0
  %341 = vmatprep.subr.mxu0 0.0
  %342 = vmatpush1.msra.mxu0 0.0
  %343 = vmatprep.mubr.f32.mxu0 0.0
  %344 = vmatmul.mubr.f32.gmra.mrb[0].mxu0 %v84
  %v345 = vpop.f32.mrb[0].mxu0
  %v346 = vadd.f32 0.0, %v345
  %v347 = vpop.f32.mrb[0].mxu0
  %348 = vmatprep.mubr.f32.mxu0 0.0
  %349 = vmatmul.mubr.f32.gmra.mrb[0].mxu0 %v87
  %v350 = vpop.f32.mrb[0].mxu0
  %v351 = vadd.f32 0.0, %v350
  %v352 = vpop.f32.mrb[0].mxu0
  %353 = vmatprep.mubr.f32.mxu0 0.0
  %354 = vmatmul.mubr.f32.gmra.mrb[0].mxu0 %v90
  %v355 = vpop.f32.mrb[0].mxu0
  %v356 = vadd.f32 0.0, %v355
  %v357 = vpop.f32.mrb[0].mxu0
  %358 = vmatprep.mubr.f32.mxu0 0.0
  %359 = vmatmul.mubr.f32.gmra.mrb[0].mxu0 %v93
  %v360 = vpop.f32.mrb[0].mxu0
  %v361 = vadd.f32 0.0, %v360
  %v362 = vpop.f32.mrb[0].mxu0
  %363 = vmatprep.mubr.f32.mxu0 0.0
  %364 = vmatmul.mubr.f32.gmra.mrb[0].mxu0 %v96
  %v365 = vpop.f32.mrb[0].mxu0
  %v366 = vadd.f32 0.0, %v365
  %v367 = vpop.f32.mrb[0].mxu0
  %368 = vmatprep.mubr.f32.mxu0 0.0
  %369 = vmatmul.mubr.f32.gmra.mrb[0].mxu0 %v99
  %v370 = vpop.f32.mrb[0].mxu0
  %v371 = vadd.f32 0.0, %v370
  %v372 = vpop.f32.mrb[0].mxu0
  %373 = vmatprep.mubr.f32.mxu0 0.0
  %374 = vmatmul.mubr.f32.gmra.mrb[0].mxu0 %v102
  %v375 = vpop.f32.mrb[0].mxu0
  %v376 = vadd.f32 0.0, %v375
  %v377 = vpop.f32.mrb[0].mxu0
  %378 = vmatprep.mubr.f32.mxu0 0.0
  %379 = vmatmul.mubr.f32.gmra.mrb[0].mxu0 %v105
  %v380 = vpop.f32.mrb[0].mxu0
  %v381 = vadd.f32 0.0, %v380
  %v382 = vpop.f32.mrb[0].mxu0
  %383 = vmatprep.mubr.f32.mxu0 0.0
  %384 = vmatmul.mubr.f32.gmra.mrb[0].mxu0 %v108
  %v385 = vpop.f32.mrb[0].mxu0
  %v386 = vadd.f32 0.0, %v385
  %v387 = vpop.f32.mrb[0].mxu0
  %388 = vmatprep.mubr.f32.mxu0 0.0
  %389 = vmatmul.mubr.f32.gmra.mrb[0].mxu0 %v111
  %v390 = vpop.f32.mrb[0].mxu0
  %v391 = vadd.f32 0.0, %v390
  %v392 = vpop.f32.mrb[0].mxu0
  %393 = vmatprep.mubr.f32.mxu0 0.0
  %394 = vmatmul.mubr.f32.gmra.mrb[0].mxu0 %v114
  %v395 = vpop.f32.mrb[0].mxu0
  %v396 = vadd.f32 0.0, %v395
  %v397 = vpop.f32.mrb[0].mxu0
  %398 = vmatprep.mubr.f32.mxu0 0.0
  %399 = vmatmul.mubr.f32.gmra.mrb[0].mxu0 %v117
  %v400 = vpop.f32.mrb[0].mxu0
  %v401 = vadd.f32 0.0, %v400
  %v402 = vpop.f32.mrb[0].mxu0
  %403 = vmatprep.mubr.f32.mxu0 0.0
  %404 = vmatmul.mubr.f32.gmra.mrb[0].mxu0 %v120
  %v405 = vpop.f32.mrb[0].mxu0
  %v406 = vadd.f32 0.0, %v405
  %v407 = vpop.f32.mrb[0].mxu0
  %408 = vmatprep.mubr.f32.mxu0 0.0
  %409 = vmatmul.mubr.f32.gmra.mrb[0].mxu0 %v123
  %v410 = vpop.f32.mrb[0].mxu0
  %v411 = vadd.f32 0.0, %v410
  %v412 = vpop.f32.mrb[0].mxu0
  %413 = vmatprep.mubr.f32.mxu0 0.0
  %414 = vmatmul.mubr.f32.gmra.mrb[0].mxu0 %v126
  %v415 = vpop.f32.mrb[0].mxu0
  %v416 = vadd.f32 0.0, %v415
  %v417 = vpop.f32.mrb[0].mxu0
  %418 = vmatprep.mubr.f32.mxu0 0.0
  %419 = vmatmul.mubr.f32.gmra.mrb[0].mxu0 %v129
  %v420 = vpop.f32.mrb[0].mxu0
  %v421 = vadd.f32 0.0, %v420
  %v422 = vpop.f32.mrb[0].mxu0
  %423 = vmatprep.mubr.f32.mxu0 0.0
  %424 = vmatmul.mubr.f32.gmra.mrb[0].mxu0 %v132
  %v425 = vpop.f32.mrb[0].mxu0
  %v426 = vadd.f32 0.0, %v425
  %v427 = vpop.f32.mrb[0].mxu0
  %428 = vmatprep.mubr.f32.mxu0 0.0
  %429 = vmatmul.mubr.f32.gmra.mrb[0].mxu0 %v135
  %v430 = vpop.f32.mrb[0].mxu0
  %v431 = vadd.f32 0.0, %v430
  %v432 = vpop.f32.mrb[0].mxu0
  %433 = vmatprep.mubr.f32.mxu0 0.0
  %434 = vmatmul.mubr.f32.gmra.mrb[0].mxu0 %v138
  %v435 = vpop.f32.mrb[0].mxu0
  %v436 = vadd.f32 0.0, %v435
  %v437 = vpop.f32.mrb[0].mxu0
  %438 = vmatprep.mubr.f32.mxu0 0.0
  %439 = vmatmul.mubr.f32.gmra.mrb[0].mxu0 %v141
  %v440 = vpop.f32.mrb[0].mxu0
  %v441 = vadd.f32 0.0, %v440
  %v442 = vpop.f32.mrb[0].mxu0
  %443 = vmatprep.mubr.f32.mxu0 0.0
  %444 = vmatmul.mubr.f32.gmra.mrb[0].mxu0 %v144
  %v445 = vpop.f32.mrb[0].mxu0
  %v446 = vadd.f32 0.0, %v445
  %v447 = vpop.f32.mrb[0].mxu0
  %448 = vmatprep.mubr.f32.mxu0 0.0
  %449 = vmatmul.mubr.f32.gmra.mrb[0].mxu0 %v147
  %v450 = vpop.f32.mrb[0].mxu0
  %v451 = vadd.f32 0.0, %v450
  %v452 = vpop.f32.mrb[0].mxu0
  %453 = vmatprep.mubr.f32.mxu0 0.0
  %454 = vmatmul.mubr.f32.gmra.mrb[0].mxu0 %v150
  %v455 = vpop.f32.mrb[0].mxu0
  %v456 = vadd.f32 0.0, %v455
  %v457 = vpop.f32.mrb[0].mxu0
  %458 = vmatprep.mubr.f32.mxu0 0.0
  %459 = vmatmul.mubr.f32.gmra.mrb[0].mxu0 %v153
  %v460 = vpop.f32.mrb[0].mxu0
  %v461 = vadd.f32 0.0, %v460
  %v462 = vpop.f32.mrb[0].mxu0
  %463 = vmatprep.mubr.f32.mxu0 0.0
  %464 = vmatmul.mubr.f32.gmra.mrb[0].mxu0 %v156
  %v465 = vpop.f32.mrb[0].mxu0
  %v466 = vadd.f32 0.0, %v465
  %v467 = vpop.f32.mrb[0].mxu0
  %468 = vmatprep.mubr.f32.mxu0 0.0
  %469 = vmatmul.mubr.f32.gmra.mrb[0].mxu0 %v159
  %v470 = vpop.f32.mrb[0].mxu0
  %v471 = vadd.f32 0.0, %v470
  %v472 = vpop.f32.mrb[0].mxu0
  %473 = vmatprep.mubr.f32.mxu0 0.0
  %474 = vmatmul.mubr.f32.gmra.mrb[0].mxu0 %v162
  %v475 = vpop.f32.mrb[0].mxu0
  %v476 = vadd.f32 0.0, %v475
  %v477 = vpop.f32.mrb[0].mxu0
  %478 = vmatprep.mubr.f32.mxu0 0.0
  %479 = vmatmul.mubr.f32.gmra.mrb[0].mxu0 %v165
  %v480 = vpop.f32.mrb[0].mxu0
  %v481 = vadd.f32 0.0, %v480
  %v482 = vpop.f32.mrb[0].mxu0
  %483 = vmatprep.mubr.f32.mxu0 0.0
  %484 = vmatmul.mubr.f32.gmra.mrb[0].mxu0 %v168
  %v485 = vpop.f32.mrb[0].mxu0
  %v486 = vadd.f32 0.0, %v485
  %v487 = vpop.f32.mrb[0].mxu0
  %488 = vmatprep.mubr.f32.mxu0 0.0
  %489 = vmatmul.mubr.f32.gmra.mrb[0].mxu0 %v171
  %v490 = vpop.f32.mrb[0].mxu0
  %v491 = vadd.f32 0.0, %v490
  %v492 = vpop.f32.mrb[0].mxu0
  %493 = vmatprep.mubr.f32.mxu0 0.0
  %494 = vmatmul.mubr.f32.gmra.mrb[0].mxu0 %v174
  %v495 = vpop.f32.mrb[0].mxu0
  %v496 = vadd.f32 0.0, %v495
  %v497 = vpop.f32.mrb[0].mxu0
  %498 = vmatprep.mubr.f32.mxu0 0.0
  %499 = vmatmul.mubr.f32.gmra.mrb[0].mxu0 %v177
  %v500 = vpop.f32.mrb[0].mxu0
  %v501 = vadd.f32 0.0, %v500
  %v502 = vpop.f32.mrb[0].mxu0
  %503 = vmatprep.mubr.f32.mxu0 0.0
  %504 = vmatmul.mubr.f32.gmra.mrb[0].mxu0 %v180
  %v505 = vpop.f32.mrb[0].mxu0
  %v506 = vadd.f32 0.0, %v505
  %v507 = vpop.f32.mrb[0].mxu0
  %508 = vmatprep.mubr.f32.mxu0 0.0
  %509 = vmatmul.mubr.f32.gmra.mrb[0].mxu0 %v183
  %v510 = vpop.f32.mrb[0].mxu0
  %v511 = vadd.f32 0.0, %v510
  %v512 = vpop.f32.mrb[0].mxu0
  %513 = vmatprep.mubr.f32.mxu0 0.0
  %514 = vmatmul.mubr.f32.gmra.mrb[0].mxu0 %v186
  %v515 = vpop.f32.mrb[0].mxu0
  %v516 = vadd.f32 0.0, %v515
  %v517 = vpop.f32.mrb[0].mxu0
  %518 = vmatprep.mubr.f32.mxu0 0.0
  %519 = vmatmul.mubr.f32.gmra.mrb[0].mxu0 %v189
  %v520 = vpop.f32.mrb[0].mxu0
  %v521 = vadd.f32 0.0, %v520
  %v522 = vpop.f32.mrb[0].mxu0
  %523 = vmatprep.mubr.f32.mxu0 0.0
  %524 = vmatmul.mubr.f32.gmra.mrb[0].mxu0 %v192
  %v525 = vpop.f32.mrb[0].mxu0
  %v526 = vadd.f32 0.0, %v525
  %v527 = vpop.f32.mrb[0].mxu0
  %528 = vmatprep.mubr.f32.mxu0 0.0
  %529 = vmatmul.mubr.f32.gmra.mrb[0].mxu0 %v195
  %v530 = vpop.f32.mrb[0].mxu0
  %v531 = vadd.f32 0.0, %v530
  %v532 = vpop.f32.mrb[0].mxu0
  %533 = vmatprep.mubr.f32.mxu0 0.0
  %534 = vmatmul.mubr.f32.gmra.mrb[0].mxu0 %v198
  %v535 = vpop.f32.mrb[0].mxu0
  %v536 = vadd.f32 0.0, %v535
  %v537 = vpop.f32.mrb[0].mxu0
  %538 = vmatprep.mubr.f32.mxu0 0.0
  %539 = vmatmul.mubr.f32.gmra.mrb[0].mxu0 %v201
  %v540 = vpop.f32.mrb[0].mxu0
  %v541 = vadd.f32 0.0, %v540
  %v542 = vpop.f32.mrb[0].mxu0
  %543 = vmatprep.mubr.f32.mxu0 0.0
  %544 = vmatmul.mubr.f32.gmra.mrb[0].mxu0 %v204
  %v545 = vpop.f32.mrb[0].mxu0
  %v546 = vadd.f32 0.0, %v545
  %v547 = vpop.f32.mrb[0].mxu0
  %548 = vmatprep.mubr.f32.mxu0 0.0
  %549 = vmatmul.mubr.f32.gmra.mrb[0].mxu0 %v207
  %v550 = vpop.f32.mrb[0].mxu0
  %v551 = vadd.f32 0.0, %v550
  %v552 = vpop.f32.mrb[0].mxu0
  %553 = vmatprep.mubr.f32.mxu0 0.0
  %554 = vmatmul.mubr.f32.gmra.mrb[0].mxu0 %v210
  %v555 = vpop.f32.mrb[0].mxu0
  %v556 = vadd.f32 0.0, %v555
  %v557 = vpop.f32.mrb[0].mxu0
  %558 = vmatprep.mubr.f32.mxu0 0.0
  %559 = vmatmul.mubr.f32.gmra.mrb[0].mxu0 %v213
  %v560 = vpop.f32.mrb[0].mxu0
  %v561 = vadd.f32 0.0, %v560
  %v562 = vpop.f32.mrb[0].mxu0
  %563 = vmatprep.mubr.f32.mxu0 0.0
  %564 = vmatmul.mubr.f32.gmra.mrb[0].mxu0 %v216
  %v565 = vpop.f32.mrb[0].mxu0
  %v566 = vadd.f32 0.0, %v565
  %v567 = vpop.f32.mrb[0].mxu0
  %568 = vmatprep.mubr.f32.mxu0 0.0
  %569 = vmatmul.mubr.f32.gmra.mrb[0].mxu0 %v219
  %v570 = vpop.f32.mrb[0].mxu0
  %v571 = vadd.f32 0.0, %v570
  %v572 = vpop.f32.mrb[0].mxu0
  %573 = vmatprep.mubr.f32.mxu0 0.0
  %574 = vmatmul.mubr.f32.gmra.mrb[0].mxu0 %v222
  %v575 = vpop.f32.mrb[0].mxu0
  %v576 = vadd.f32 0.0, %v575
  %v577 = vpop.f32.mrb[0].mxu0
  %578 = vmatprep.mubr.f32.mxu0 0.0
  %579 = vmatmul.mubr.f32.gmra.mrb[0].mxu0 %v225
  %v580 = vpop.f32.mrb[0].mxu0
  %v581 = vadd.f32 0.0, %v580
  %v582 = vpop.f32.mrb[0].mxu0
  %583 = vmatprep.mubr.f32.mxu0 0.0
  %584 = vmatmul.mubr.f32.gmra.mrb[0].mxu0 %v228
  %v585 = vpop.f32.mrb[0].mxu0
  %v586 = vadd.f32 0.0, %v585
  %v587 = vpop.f32.mrb[0].mxu0
  %588 = vmatprep.mubr.f32.mxu0 0.0
  %589 = vmatmul.mubr.f32.gmra.mrb[0].mxu0 %v231
  %v590 = vpop.f32.mrb[0].mxu0
  %v591 = vadd.f32 0.0, %v590
  %v592 = vpop.f32.mrb[0].mxu0
  %593 = vmatprep.mubr.f32.mxu0 0.0
  %594 = vmatmul.mubr.f32.gmra.mrb[0].mxu0 %v234
  %v595 = vpop.f32.mrb[0].mxu0
  %v596 = vadd.f32 0.0, %v595
  %v597 = vpop.f32.mrb[0].mxu0
  %598 = vmatprep.mubr.f32.mxu0 0.0
  %599 = vmatmul.mubr.f32.gmra.mrb[0].mxu0 %v237
  %v600 = vpop.f32.mrb[0].mxu0
  %v601 = vadd.f32 0.0, %v600
  %v602 = vpop.f32.mrb[0].mxu0
  %603 = vmatprep.mubr.f32.mxu0 0.0
  %604 = vmatmul.mubr.f32.gmra.mrb[0].mxu0 %v240
  %v605 = vpop.f32.mrb[0].mxu0
  %v606 = vadd.f32 0.0, %v605
  %v607 = vpop.f32.mrb[0].mxu0
  %608 = vmatprep.mubr.f32.mxu0 0.0
  %609 = vmatmul.mubr.f32.gmra.mrb[0].mxu0 %v243
  %v610 = vpop.f32.mrb[0].mxu0
  %v611 = vadd.f32 0.0, %v610
  %v612 = vpop.f32.mrb[0].mxu0
  %613 = vmatprep.mubr.f32.mxu0 0.0
  %614 = vmatmul.mubr.f32.gmra.mrb[0].mxu0 %v246
  %v615 = vpop.f32.mrb[0].mxu0
  %v616 = vadd.f32 0.0, %v615
  %v617 = vpop.f32.mrb[0].mxu0
  %618 = vmatprep.mubr.f32.mxu0 0.0
  %619 = vmatmul.mubr.f32.gmra.mrb[0].mxu0 %v249
  %v620 = vpop.f32.mrb[0].mxu0
  %v621 = vadd.f32 0.0, %v620
  %v622 = vpop.f32.mrb[0].mxu0
  %623 = vmatprep.mubr.f32.mxu0 0.0
  %624 = vmatmul.mubr.f32.gmra.mrb[0].mxu0 %v252
  %v625 = vpop.f32.mrb[0].mxu0
  %v626 = vadd.f32 0.0, %v625
  %v627 = vpop.f32.mrb[0].mxu0
  %628 = vmatprep.mubr.f32.mxu0 0.0
  %629 = vmatmul.mubr.f32.gmra.mrb[0].mxu0 %v255
  %v630 = vpop.f32.mrb[0].mxu0
  %v631 = vadd.f32 0.0, %v630
  %v632 = vpop.f32.mrb[0].mxu0
  %633 = vmatprep.mubr.f32.mxu0 0.0
  %634 = vmatmul.mubr.f32.gmra.mrb[0].mxu0 %v258
  %v635 = vpop.f32.mrb[0].mxu0
  %v636 = vadd.f32 0.0, %v635
  %v637 = vpop.f32.mrb[0].mxu0
  %638 = vmatprep.mubr.f32.mxu0 0.0
  %639 = vmatmul.mubr.f32.gmra.mrb[0].mxu0 %v261
  %v640 = vpop.f32.mrb[0].mxu0
  %v641 = vadd.f32 0.0, %v640
  %v642 = vpop.f32.mrb[0].mxu0
  %643 = vmatprep.mubr.f32.mxu0 0.0
  %644 = vmatmul.mubr.f32.gmra.mrb[0].mxu0 %v264
  %v645 = vpop.f32.mrb[0].mxu0
  %v646 = vadd.f32 0.0, %v645
  %v647 = vpop.f32.mrb[0].mxu0
  %648 = vmatprep.mubr.f32.mxu0 0.0
  %649 = vmatmul.mubr.f32.gmra.mrb[0].mxu0 %v267
  %v650 = vpop.f32.mrb[0].mxu0
  %v651 = vadd.f32 0.0, %v650
  %v652 = vpop.f32.mrb[0].mxu0
  %653 = vmatprep.mubr.f32.mxu0 0.0
  %654 = vmatmul.mubr.f32.gmra.mrb[0].mxu0 %v270
  %v655 = vpop.f32.mrb[0].mxu0
  %v656 = vadd.f32 0.0, %v655
  %v657 = vpop.f32.mrb[0].mxu0
  %658 = vmatprep.mubr.f32.mxu0 0.0
  %659 = vmatmul.mubr.f32.gmra.mrb[0].mxu0 %v273
  %v660 = vpop.f32.mrb[0].mxu0
  %v661 = vadd.f32 0.0, %v660
  %v662 = vpop.f32.mrb[0].mxu0
  %663 = vdwg.mxu0
  %664 = vst [vmem:[%s2] sm:$0xff] %v346
  %665 = vst [vmem:[%s2 + $0x8] sm:$0xff] %v351
  %666 = vst [vmem:[%s2 + $0x10] sm:$0xff] %v356
  %667 = vst [vmem:[%s2 + $0x18] sm:$0xff] %v361
  %668 = vst [vmem:[%s2 + $0x20] sm:$0xff] %v366
  %669 = vst [vmem:[%s2 + $0x28] sm:$0xff] %v371
  %670 = vst [vmem:[%s2 + $0x30] sm:$0xff] %v376
  %671 = vst [vmem:[%s2 + $0x38] sm:$0xff] %v381
  %672 = vst [vmem:[%s2 + $0x40] sm:$0xff] %v386
  %673 = vst [vmem:[%s2 + $0x48] sm:$0xff] %v391
  %674 = vst [vmem:[%s2 + $0x50] sm:$0xff] %v396
  %675 = vst [vmem:[%s2 + $0x58] sm:$0xff] %v401
  %676 = vst [vmem:[%s2 + $0x60] sm:$0xff] %v406
  %677 = vst [vmem:[%s2 + $0x68] sm:$0xff] %v411
  %678 = vst [vmem:[%s2 + $0x70] sm:$0xff] %v416
  %679 = vst [vmem:[%s2 + $0x78] sm:$0xff] %v421
  %680 = vst [vmem:[%s2 + $0x80] sm:$0xff] %v426
  %681 = vst [vmem:[%s2 + $0x88] sm:$0xff] %v431
  %682 = vst [vmem:[%s2 + $0x90] sm:$0xff] %v436
  %683 = vst [vmem:[%s2 + $0x98] sm:$0xff] %v441
  %684 = vst [vmem:[%s2 + $0xa0] sm:$0xff] %v446
  %685 = vst [vmem:[%s2 + $0xa8] sm:$0xff] %v451
  %686 = vst [vmem:[%s2 + $0xb0] sm:$0xff] %v456
  %687 = vst [vmem:[%s2 + $0xb8] sm:$0xff] %v461
  %688 = vst [vmem:[%s2 + $0xc0] sm:$0xff] %v466
  %689 = vst [vmem:[%s2 + $0xc8] sm:$0xff] %v471
  %690 = vst [vmem:[%s2 + $0xd0] sm:$0xff] %v476
  %691 = vst [vmem:[%s2 + $0xd8] sm:$0xff] %v481
  %692 = vst [vmem:[%s2 + $0xe0] sm:$0xff] %v486
  %693 = vst [vmem:[%s2 + $0xe8] sm:$0xff] %v491
  %694 = vst [vmem:[%s2 + $0xf0] sm:$0xff] %v496
  %695 = vst [vmem:[%s2 + $0xf8] sm:$0xff] %v501
  %696 = vst [vmem:[%s2 + $0x100] sm:$0xff] %v506
  %697 = vst [vmem:[%s2 + $0x108] sm:$0xff] %v511
  %698 = vst [vmem:[%s2 + $0x110] sm:$0xff] %v516
  %699 = vst [vmem:[%s2 + $0x118] sm:$0xff] %v521
  %700 = vst [vmem:[%s2 + $0x120] sm:$0xff] %v526
  %701 = vst [vmem:[%s2 + $0x128] sm:$0xff] %v531
  %702 = vst [vmem:[%s2 + $0x130] sm:$0xff] %v536
  %703 = vst [vmem:[%s2 + $0x138] sm:$0xff] %v541
  %704 = vst [vmem:[%s2 + $0x140] sm:$0xff] %v546
  %705 = vst [vmem:[%s2 + $0x148] sm:$0xff] %v551
  %706 = vst [vmem:[%s2 + $0x150] sm:$0xff] %v556
  %707 = vst [vmem:[%s2 + $0x158] sm:$0xff] %v561
  %708 = vst [vmem:[%s2 + $0x160] sm:$0xff] %v566
  %709 = vst [vmem:[%s2 + $0x168] sm:$0xff] %v571
  %710 = vst [vmem:[%s2 + $0x170] sm:$0xff] %v576
  %711 = vst [vmem:[%s2 + $0x178] sm:$0xff] %v581
  %712 = vst [vmem:[%s2 + $0x180] sm:$0xff] %v586
  %713 = vst [vmem:[%s2 + $0x188] sm:$0xff] %v591
  %714 = vst [vmem:[%s2 + $0x190] sm:$0xff] %v596
  %715 = vst [vmem:[%s2 + $0x198] sm:$0xff] %v601
  %716 = vst [vmem:[%s2 + $0x1a0] sm:$0xff] %v606
  %717 = vst [vmem:[%s2 + $0x1a8] sm:$0xff] %v611
  %718 = vst [vmem:[%s2 + $0x1b0] sm:$0xff] %v616
  %719 = vst [vmem:[%s2 + $0x1b8] sm:$0xff] %v621
  %720 = vst [vmem:[%s2 + $0x1c0] sm:$0xff] %v626
  %721 = vst [vmem:[%s2 + $0x1c8] sm:$0xff] %v631
  %722 = vst [vmem:[%s2 + $0x1d0] sm:$0xff] %v636
  %723 = vst [vmem:[%s2 + $0x1d8] sm:$0xff] %v641
  %724 = vst [vmem:[%s2 + $0x1e0] sm:$0xff] %v646
  %725 = vst [vmem:[%s2 + $0x1e8] sm:$0xff] %v651
  %726 = vst [vmem:[%s2 + $0x1f0] sm:$0xff] %v656
  %727 = vst [vmem:[%s2 + $0x1f8] sm:$0xff] %v661
  %v728 = vadd.f32 %v346, %v351
  %v729 = vadd.f32 %v728, %v356
  %v730 = vadd.f32 %v729, %v361
  %v731 = vadd.f32 %v730, %v366
  %v732 = vadd.f32 %v731, %v371
  %v733 = vadd.f32 %v732, %v376
  %v734 = vadd.f32 %v733, %v381
  %v735 = vadd.f32 %v734, %v386
  %v736 = vadd.f32 %v735, %v391
  %v737 = vadd.f32 %v736, %v396
  %v738 = vadd.f32 %v737, %v401
  %v739 = vadd.f32 %v738, %v406
  %v740 = vadd.f32 %v739, %v411
  %v741 = vadd.f32 %v740, %v416
  %v742 = vadd.f32 %v741, %v421
  %v743 = vadd.f32 %v742, %v426
  %v744 = vadd.f32 %v743, %v431
  %v745 = vadd.f32 %v744, %v436
  %v746 = vadd.f32 %v745, %v441
  %v747 = vadd.f32 %v746, %v446
  %v748 = vadd.f32 %v747, %v451
  %v749 = vadd.f32 %v748, %v456
  %v750 = vadd.f32 %v749, %v461
  %v751 = vadd.f32 %v750, %v466
  %v752 = vadd.f32 %v751, %v471
  %v753 = vadd.f32 %v752, %v476
  %v754 = vadd.f32 %v753, %v481
  %v755 = vadd.f32 %v754, %v486
  %v756 = vadd.f32 %v755, %v491
  %v757 = vadd.f32 %v756, %v496
  %v758 = vadd.f32 %v757, %v501
  %v759 = vadd.f32 %v758, %v506
  %v760 = vadd.f32 %v759, %v511
  %v761 = vadd.f32 %v760, %v516
  %v762 = vadd.f32 %v761, %v521
  %v763 = vadd.f32 %v762, %v526
  %v764 = vadd.f32 %v763, %v531
  %v765 = vadd.f32 %v764, %v536
  %v766 = vadd.f32 %v765, %v541
  %v767 = vadd.f32 %v766, %v546
  %v768 = vadd.f32 %v767, %v551
  %v769 = vadd.f32 %v768, %v556
  %v770 = vadd.f32 %v769, %v561
  %v771 = vadd.f32 %v770, %v566
  %v772 = vadd.f32 %v771, %v571
  %v773 = vadd.f32 %v772, %v576
  %v774 = vadd.f32 %v773, %v581
  %v775 = vadd.f32 %v774, %v586
  %v776 = vadd.f32 %v775, %v591
  %v777 = vadd.f32 %v776, %v596
  %v778 = vadd.f32 %v777, %v601
  %v779 = vadd.f32 %v778, %v606
  %v780 = vadd.f32 %v779, %v611
  %v781 = vadd.f32 %v780, %v616
  %v782 = vadd.f32 %v781, %v621
  %v783 = vadd.f32 %v782, %v626
  %v784 = vadd.f32 %v783, %v631
  %v785 = vadd.f32 %v784, %v636
  %v786 = vadd.f32 %v785, %v641
  %v787 = vadd.f32 %v786, %v646
  %v788 = vadd.f32 %v787, %v651
  %v789 = vadd.f32 %v788, %v656
  %v790 = vadd.f32 %v789, %v661
  %v791 = vrot.slane %v790, 4
  %v792 = vadd.f32 %v790, %v791
  %v793 = vrot.slane %v792, 2
  %v794 = vadd.f32 %v792, %v793
  %v795 = vrot.slane %v794, 1
  %v796 = vadd.f32 %v794, %v795
  %v797 = vmul.f32 %v346, %v346
  %v798 = vmul.f32 %v351, %v351
  %v799 = vmul.f32 %v356, %v356
  %v800 = vmul.f32 %v361, %v361
  %v801 = vmul.f32 %v366, %v366
  %v802 = vmul.f32 %v371, %v371
  %v803 = vmul.f32 %v376, %v376
  %v804 = vmul.f32 %v381, %v381
  %v805 = vmul.f32 %v386, %v386
  %v806 = vmul.f32 %v391, %v391
  %v807 = vmul.f32 %v396, %v396
  %v808 = vmul.f32 %v401, %v401
  %v809 = vmul.f32 %v406, %v406
  %v810 = vmul.f32 %v411, %v411
  %v811 = vmul.f32 %v416, %v416
  %v812 = vmul.f32 %v421, %v421
  %v813 = vmul.f32 %v426, %v426
  %v814 = vmul.f32 %v431, %v431
  %v815 = vmul.f32 %v436, %v436
  %v816 = vmul.f32 %v441, %v441
  %v817 = vmul.f32 %v446, %v446
  %v818 = vmul.f32 %v451, %v451
  %v819 = vmul.f32 %v456, %v456
  %v820 = vmul.f32 %v461, %v461
  %v821 = vmul.f32 %v466, %v466
  %v822 = vmul.f32 %v471, %v471
  %v823 = vmul.f32 %v476, %v476
  %v824 = vmul.f32 %v481, %v481
  %v825 = vmul.f32 %v486, %v486
  %v826 = vmul.f32 %v491, %v491
  %v827 = vmul.f32 %v496, %v496
  %v828 = vmul.f32 %v501, %v501
  %v829 = vmul.f32 %v506, %v506
  %v830 = vmul.f32 %v511, %v511
  %v831 = vmul.f32 %v516, %v516
  %v832 = vmul.f32 %v521, %v521
  %v833 = vmul.f32 %v526, %v526
  %v834 = vmul.f32 %v531, %v531
  %v835 = vmul.f32 %v536, %v536
  %v836 = vmul.f32 %v541, %v541
  %v837 = vmul.f32 %v546, %v546
  %v838 = vmul.f32 %v551, %v551
  %v839 = vmul.f32 %v556, %v556
  %v840 = vmul.f32 %v561, %v561
  %v841 = vmul.f32 %v566, %v566
  %v842 = vmul.f32 %v571, %v571
  %v843 = vmul.f32 %v576, %v576
  %v844 = vmul.f32 %v581, %v581
  %v845 = vmul.f32 %v586, %v586
  %v846 = vmul.f32 %v591, %v591
  %v847 = vmul.f32 %v596, %v596
  %v848 = vmul.f32 %v601, %v601
  %v849 = vmul.f32 %v606, %v606
  %v850 = vmul.f32 %v611, %v611
  %v851 = vmul.f32 %v616, %v616
  %v852 = vmul.f32 %v621, %v621
  %v853 = vmul.f32 %v626, %v626
  %v854 = vmul.f32 %v631, %v631
  %v855 = vmul.f32 %v636, %v636
  %v856 = vmul.f32 %v641, %v641
  %v857 = vmul.f32 %v646, %v646
  %v858 = vmul.f32 %v651, %v651
  %v859 = vmul.f32 %v656, %v656
  %v860 = vmul.f32 %v661, %v661
  %v861 = vadd.f32 %v797, %v798
  %v862 = vadd.f32 %v861, %v799
  %v863 = vadd.f32 %v862, %v800
  %v864 = vadd.f32 %v863, %v801
  %v865 = vadd.f32 %v864, %v802
  %v866 = vadd.f32 %v865, %v803
  %v867 = vadd.f32 %v866, %v804
  %v868 = vadd.f32 %v867, %v805
  %v869 = vadd.f32 %v868, %v806
  %v870 = vadd.f32 %v869, %v807
  %v871 = vadd.f32 %v870, %v808
  %v872 = vadd.f32 %v871, %v809
  %v873 = vadd.f32 %v872, %v810
  %v874 = vadd.f32 %v873, %v811
  %v875 = vadd.f32 %v874, %v812
  %v876 = vadd.f32 %v875, %v813
  %v877 = vadd.f32 %v876, %v814
  %v878 = vadd.f32 %v877, %v815
  %v879 = vadd.f32 %v878, %v816
  %v880 = vadd.f32 %v879, %v817
  %v881 = vadd.f32 %v880, %v818
  %v882 = vadd.f32 %v881, %v819
  %v883 = vadd.f32 %v882, %v820
  %v884 = vadd.f32 %v883, %v821
  %v885 = vadd.f32 %v884, %v822
  %v886 = vadd.f32 %v885, %v823
  %v887 = vadd.f32 %v886, %v824
  %v888 = vadd.f32 %v887, %v825
  %v889 = vadd.f32 %v888, %v826
  %v890 = vadd.f32 %v889, %v827
  %v891 = vadd.f32 %v890, %v828
  %v892 = vadd.f32 %v891, %v829
  %v893 = vadd.f32 %v892, %v830
  %v894 = vadd.f32 %v893, %v831
  %v895 = vadd.f32 %v894, %v832
  %v896 = vadd.f32 %v895, %v833
  %v897 = vadd.f32 %v896, %v834
  %v898 = vadd.f32 %v897, %v835
  %v899 = vadd.f32 %v898, %v836
  %v900 = vadd.f32 %v899, %v837
  %v901 = vadd.f32 %v900, %v838
  %v902 = vadd.f32 %v901, %v839
  %v903 = vadd.f32 %v902, %v840
  %v904 = vadd.f32 %v903, %v841
  %v905 = vadd.f32 %v904, %v842
  %v906 = vadd.f32 %v905, %v843
  %v907 = vadd.f32 %v906, %v844
  %v908 = vadd.f32 %v907, %v845
  %v909 = vadd.f32 %v908, %v846
  %v910 = vadd.f32 %v909, %v847
  %v911 = vadd.f32 %v910, %v848
  %v912 = vadd.f32 %v911, %v849
  %v913 = vadd.f32 %v912, %v850
  %v914 = vadd.f32 %v913, %v851
  %v915 = vadd.f32 %v914, %v852
  %v916 = vadd.f32 %v915, %v853
  %v917 = vadd.f32 %v916, %v854
  %v918 = vadd.f32 %v917, %v855
  %v919 = vadd.f32 %v918, %v856
  %v920 = vadd.f32 %v919, %v857
  %v921 = vadd.f32 %v920, %v858
  %v922 = vadd.f32 %v921, %v859
  %v923 = vadd.f32 %v922, %v860
  %v924 = vrot.slane %v923, 4
  %v925 = vadd.f32 %v923, %v924
  %v926 = vrot.slane %v925, 2
  %v927 = vadd.f32 %v925, %v926
  %v928 = vrot.slane %v927, 1
  %v929 = vadd.f32 %v927, %v928
  %vm930 = vcmask 1040384
  %v931 = vsel %vm930, %v796, %v929
  %932 = vst [vmem:[%s3] sm:$0x3] %v931
  // Predicated region
  $region10: #{conv_block_forward.2} parent=0 // pred_check
    _
  $region11: #{conv_block_forward.2} parent=0 // pred_check_branch
    %934 = sbr.rel (0) target = $region13
  $region12: #{conv_block_forward.2} parent=0 // pred_region
    _
  $region13: #{conv_block_forward.2} parent=0 // pred_fallthru
    _
  // Predicated region
  $region14: #{conv_block_forward.2} parent=0 // pred_check
    _
  $region15: #{conv_block_forward.2} parent=0 // pred_check_branch
    %936 = sbr.rel (0) target = $region17
  $region16: #{conv_block_forward.2} parent=0 // pred_region
    _
  $region17: #{conv_block_forward.2} parent=0 // pred_fallthru
    _
  // Predicated region
  $region18: #{conv_block_forward.2} parent=0 // pred_check
    _
  $region19: #{conv_block_forward.2} parent=0 // pred_check_branch
    %938 = sbr.rel (0) target = $region21
  $region20: #{conv_block_forward.2} parent=0 // pred_region
    _
  $region21: #{conv_block_forward.2} parent=0 // pred_fallthru
    _
  // Predicated region
  $region22: #{conv_block_forward.2} parent=0 // pred_check
    _
  $region23: #{conv_block_forward.2} parent=0 // pred_check_branch
    %940 = sbr.rel (0) target = $region25
  $region24: #{conv_block_forward.2} parent=0 // pred_region
    _
  $region25: #{conv_block_forward.2} parent=0 // pred_fallthru
    _

</llo_original>
